<compile_context>
chip_gen: v5e
topology: v5e:2x2
jax: 0.10.0
libtpu: 0.0.40
codegen_flags: <defaults>
</compile_context>

<pallas_src>
import jax
import jax.numpy as jnp
from jax.experimental import pallas as pl
from jax.experimental.pallas import tpu as pltpu

_LANE = 128
_SUBLANE = 8
_MAX_STATS_ROWS = 128          # keeps the (rows,128) f32 accumulators vreg-friendly
_MAX_STATS_GROUPS = 128        # static-unroll bound for the in-kernel lane-group loop
_NORM_MAX_LANES = 8192
_RAGGED_FULL_EXTENT_ROWS = 256  # ragged row counts up to this use a full-extent block


def _round_up(a, b):
    return (a + b - 1) // b * b


def _vmem_budgets():
    """(per-block byte budget, vmem_limit_bytes), generation aware."""
    vmem_bytes = 64 * 1024 * 1024                  # conservative default = v7x-class
    try:
        info = pltpu.get_tpu_info()
        v = getattr(info, "vmem_capacity_bytes", None)
        if v:
            vmem_bytes = int(v)
    except Exception:
        pass
    if vmem_bytes <= 64 * 1024 * 1024:             # v7x: 64 MiB physical per TC
        return 6 * 1024 * 1024, 28 * 1024 * 1024
    return 10 * 1024 * 1024, 48 * 1024 * 1024      # v5e / v6e: 128 MiB physical


def _padded_dims(M, R):
    Rp = _round_up(R, _LANE)
    if M % _SUBLANE == 0 or M <= _RAGGED_FULL_EXTENT_ROWS:
        Mp = M            # full-extent row blocks are legal for small ragged M
    else:
        Mp = _round_up(M, _SUBLANE)
    return Mp, Rp


def _lane_tile(Rp, max_lanes):
    rt = min(Rp, max(_LANE, (max_lanes // _LANE) * _LANE))
    while Rp % rt:
        rt -= _LANE
    return rt


def _row_tile(Mp, max_rows):
    if Mp % _SUBLANE != 0:          # ragged + small: must use the full row extent
        return Mp
    rm = min(Mp, max(_SUBLANE, (max_rows // _SUBLANE) * _SUBLANE))
    while Mp % rm:
        rm -= _SUBLANE
    return rm


# ----------------------------------------------------------------------------
# Pass 1: per-row sum / sum-of-squares, lane-dense accumulators.
# ----------------------------------------------------------------------------
def _bn_stats_kernel(x_ref, sum_ref, sq_ref):
    @pl.when(pl.program_id(2) == 0)
    def _init():
        sum_ref[...] = jnp.zeros_like(sum_ref)
        sq_ref[...] = jnp.zeros_like(sq_ref)

    n_groups = x_ref.shape[-1] // _LANE
    s = sum_ref[...]
    q = sq_ref[...]
    for g in range(n_groups):       # static unroll: 128-lane-aligned slices, pure VPU
        blk = x_ref[:, g * _LANE:(g + 1) * _LANE].astype(jnp.float32)
        s = s + blk
        q = q + blk * blk
    sum_ref[...] = s
    sq_ref[...] = q


def _batchnorm2d_stats(x2, block_budget, vmem_limit):
    Mp, Rp = x2.shape
    rm = _row_tile(Mp, _MAX_STATS_ROWS)
    max_lanes = min(_MAX_STATS_GROUPS * _LANE,
                    max(_LANE, block_budget // (rm * 4)))
    rt = _lane_tile(Rp, max_lanes)
    row_blocks, lane_blocks = Mp // rm, Rp // rt
    # v7x megacore: if the row axis cannot be split across the two TensorCores,
    # split the reduction axis into (outer parallel, inner arbitrary) and finish
    # the tiny extra reduction in the JAX postlude.  No effect on v5e/v6e.
    n_outer = 2 if (row_blocks == 1 and lane_blocks % 2 == 0 and lane_blocks >= 2) else 1
    inner = lane_blocks // n_outer

    sums, sqs = pl.pallas_call(
        _bn_stats_kernel,
        out_shape=(
            jax.ShapeDtypeStruct((Mp, n_outer * _LANE), jnp.float32),
            jax.ShapeDtypeStruct((Mp, n_outer * _LANE), jnp.float32),
        ),
        grid=(row_blocks, n_outer, inner),
        in_specs=[pl.BlockSpec((rm, rt), lambda i, j, k: (i, j * inner + k))],
        out_specs=(
            pl.BlockSpec((rm, _LANE), lambda i, j, k: (i, j)),
            pl.BlockSpec((rm, _LANE), lambda i, j, k: (i, j)),
        ),
        compiler_params=pltpu.CompilerParams(
            dimension_semantics=("parallel", "parallel", "arbitrary"),
            vmem_limit_bytes=vmem_limit),
    )(x2)
    # (Mp, n_outer*128) lane-dense partials -> per-row totals (tiny JAX reduce).
    return jnp.sum(sums, axis=-1), jnp.sum(sqs, axis=-1)


# ----------------------------------------------------------------------------
# Pass 2: tiled elementwise normalize with folded per-row scale/shift.
# ----------------------------------------------------------------------------
def _bn_normalize_kernel(x_ref, scale_ref, shift_ref, out_ref):
    # TODO(synk): on v6e/v7x with bf16 inputs the math could stay in bf16
    # (native bf16 VALU); f32 is kept for cross-generation safety (v5e).
    x = x_ref[...].astype(jnp.float32)
    out_ref[...] = (x * scale_ref[...] + shift_ref[...]).astype(out_ref.dtype)


def _batchnorm2d_normalize(x2, scale_rows, shift_rows, block_budget, vmem_limit):
    Mp, Rp = x2.shape
    if Mp % _SUBLANE != 0:
        rm = Mp                                        # forced full-extent row block
        rt = _lane_tile(Rp, max(_LANE, block_budget // (rm * 4)))
    else:
        rt = _lane_tile(Rp, _NORM_MAX_LANES)
        rm = _row_tile(Mp, max(_SUBLANE, block_budget // (rt * 4)))

    return pl.pallas_call(
        _bn_normalize_kernel,
        out_shape=jax.ShapeDtypeStruct((Mp, Rp), x2.dtype),
        grid=(Mp // rm, Rp // rt),
        in_specs=[
            pl.BlockSpec((rm, rt), lambda i, j: (i, j)),
            pl.BlockSpec((rm, 1), lambda i, j: (i, 0)),
            pl.BlockSpec((rm, 1), lambda i, j: (i, 0)),
        ],
        out_specs=pl.BlockSpec((rm, rt), lambda i, j: (i, j)),
        compiler_params=pltpu.CompilerParams(
            dimension_semantics=("parallel", "parallel"),
            vmem_limit_bytes=vmem_limit),
    )(x2, scale_rows, shift_rows)


# ----------------------------------------------------------------------------
# Wrappers
# ----------------------------------------------------------------------------
def _flatten_pad(x_nchw):
    N, C, H, W = x_nchw.shape
    M, R = N * C, H * W
    Mp, Rp = _padded_dims(M, R)
    x2 = x_nchw.reshape(M, R)                   # free reshape (contiguous dims)
    if (Mp, Rp) != (M, R):
        x2 = jnp.pad(x2, ((0, Mp - M), (0, Rp - R)))   # zero pad: exact for stats
    return x2, M, R, Mp, Rp


def _per_row(vals_c, N, Mp):
    """(C,) per-channel values -> (Mp, 1) per-row values (row index = n*C + c)."""
    rows = jnp.tile(vals_c.astype(jnp.float32), (N,))
    if Mp != rows.shape[0]:
        rows = jnp.pad(rows, (0, Mp - rows.shape[0]))
    return rows.reshape(Mp, 1)


def batchnorm2d_forward(x_nchw, gamma, beta, eps=1e-6):
    """x_nchw: (N, C, H, W). Returns (out_nchw, mean_c, var_c)."""
    N, C, H, W = x_nchw.shape
    block_budget, vmem_limit = _vmem_budgets()
    x2, M, R, Mp, Rp = _flatten_pad(x_nchw)

    row_sum, row_sq = _batchnorm2d_stats(x2, block_budget, vmem_limit)

    # Tiny per-channel reductions + scale/shift folding in plain JAX (f32).
    count = float(N) * float(R)
    mean = row_sum[:M].reshape(N, C).sum(axis=0) / count
    ex2 = row_sq[:M].reshape(N, C).sum(axis=0) / count
    # TODO(synk): E[x^2]-mean^2 can cancel catastrophically when |mean| >> std;
    # switch to a centered second stats pass for ill-conditioned channels.
    var = jnp.maximum(ex2 - mean * mean, 0.0)          # biased (population) variance

    inv = 1.0 / (jnp.sqrt(var) + eps)                  # module semantics: eps OUTSIDE sqrt
    scale = gamma.astype(jnp.float32) * inv
    shift = beta.astype(jnp.float32) - mean * scale

    out2 = _batchnorm2d_normalize(
        x2, _per_row(scale, N, Mp), _per_row(shift, N, Mp),
        block_budget, vmem_limit)
    out = out2[:M, :R].reshape(N, C, H, W)
    return out, mean, var


class BatchNorm2D:
    """Mirror of the PyTorch module's state handling (running stats in plain JAX)."""

    def __init__(self, num_features, eps=1e-6, momentum=0.1):
        self.num_features = num_features
        self.eps = eps
        self.momentum = momentum
        # deterministic init, matching nn.Parameter(torch.ones/zeros)
        self.gamma = jnp.ones((num_features,), dtype=jnp.float32)
        self.beta = jnp.zeros((num_features,), dtype=jnp.float32)
        self.first = True
        self.running_mean = jnp.zeros((num_features,), dtype=jnp.float32)
        self.running_var = jnp.zeros((num_features,), dtype=jnp.float32)

    def __call__(self, x, train_mode=True):
        assert x.ndim == 4
        if train_mode:
            out, mean, var = batchnorm2d_forward(x, self.gamma, self.beta, self.eps)
            if self.first:
                self.running_mean = mean
                self.running_var = var
                self.first = False
            else:
                m = self.momentum
                self.running_mean = (1 - m) * self.running_mean + m * mean
                self.running_var = (1 - m) * self.running_var + m * var
            return out
        else:
            # eval mode: fold running stats into scale/shift, reuse the tiled
            # normalize kernel.
            N, C, H, W = x.shape
            block_budget, vmem_limit = _vmem_budgets()
            x2, M, R, Mp, Rp = _flatten_pad(x)
            inv = 1.0 / (jnp.sqrt(self.running_var) + self.eps)
            scale = self.gamma * inv
            shift = self.beta - self.running_mean * scale
            out2 = _batchnorm2d_normalize(
                x2, _per_row(scale, N, Mp), _per_row(shift, N, Mp),
                block_budget, vmem_limit)
            return out2[:M, :R].reshape(N, C, H, W)


if __name__ == "__main__":
    key = jax.random.PRNGKey(0)
    N, C, H, W = 2, 4, 16, 16
    x = jax.random.normal(key, (N, C, H, W), dtype=jnp.float32)

    bn = BatchNorm2D(C, eps=1e-6, momentum=0.1)
    out = bn(x, train_mode=True)
    out = jax.block_until_ready(out)

    # reference in plain JAX (same formula as the PyTorch module)
    mean_ref = jnp.mean(x, axis=(0, 2, 3), keepdims=True)
    var_ref = jnp.mean((x - mean_ref) ** 2, axis=(0, 2, 3), keepdims=True)
    ref = (x - mean_ref) / (jnp.sqrt(var_ref) + 1e-6)
    ref = ref * bn.gamma[None, :, None, None] + bn.beta[None, :, None, None]

    assert out.shape == (N, C, H, W)
    assert jnp.allclose(out, ref, atol=1e-5, rtol=1e-5), float(jnp.max(jnp.abs(out - ref)))

    # also exercise eval mode once (same tiled normalize kernel)
    out_eval = jax.block_until_ready(bn(x, train_mode=False))
    assert out_eval.shape == (N, C, H, W)

    print("KERNEL_OK")
</pallas_src>

<mosaic_0001>
module attributes {stable_mosaic.version = 11 : i64} {
  func.func @_bn_stats_kernel(%arg0: i32, %arg1: i32, %arg2: i32, %arg3: memref<8x256xf32, #tpu.memory_space<vmem>>, %arg4: memref<8x128xf32, #tpu.memory_space<vmem>>, %arg5: memref<8x128xf32, #tpu.memory_space<vmem>>) attributes {dimension_semantics = [#tpu.dimension_semantics<parallel>, #tpu.dimension_semantics<parallel>, #tpu.dimension_semantics<arbitrary>], iteration_bounds = array<i64: 1, 1, 1>, scalar_prefetch = 0 : i64, scratch_operands = 0 : i64, tpu.core_type = #tpu.core_type<tc>, window_params = [{transform_indices = @transform_0, window_bounds = array<i64: 8, 256>}, {transform_indices = @transform_1, window_bounds = array<i64: 8, 128>}, {transform_indices = @transform_2, window_bounds = array<i64: 8, 128>}]} {
    %c0_i32 = arith.constant 0 : i32
    %0 = arith.cmpi eq, %arg2, %c0_i32 : i32
    %1 = arith.extui %0 : i1 to i32
    %c0_i32_0 = arith.constant 0 : i32
    %2 = arith.cmpi ne, %1, %c0_i32_0 : i32
    scf.if %2 {
      %cst = arith.constant 0.000000e+00 : f32
      %15 = vector.broadcast %cst : f32 to vector<8x128xf32>
      %c0_11 = arith.constant 0 : index
      %c0_12 = arith.constant 0 : index
      %16 = vector.load %arg4[%c0_11, %c0_12] : memref<8x128xf32, #tpu.memory_space<vmem>>, vector<8x128xf32>
      tpu.vector_store %arg4[%c0_11, %c0_12], %15 {strides = array<i32>} : memref<8x128xf32, #tpu.memory_space<vmem>>, vector<8x128xf32>,
      %cst_13 = arith.constant 0.000000e+00 : f32
      %17 = vector.broadcast %cst_13 : f32 to vector<8x128xf32>
      %c0_14 = arith.constant 0 : index
      %c0_15 = arith.constant 0 : index
      %18 = vector.load %arg5[%c0_14, %c0_15] : memref<8x128xf32, #tpu.memory_space<vmem>>, vector<8x128xf32>
      tpu.vector_store %arg5[%c0_14, %c0_15], %17 {strides = array<i32>} : memref<8x128xf32, #tpu.memory_space<vmem>>, vector<8x128xf32>,
    } else {
    }
    %c0 = arith.constant 0 : index
    %c0_1 = arith.constant 0 : index
    %3 = vector.load %arg4[%c0, %c0_1] : memref<8x128xf32, #tpu.memory_space<vmem>>, vector<8x128xf32>
    %c0_2 = arith.constant 0 : index
    %c0_3 = arith.constant 0 : index
    %4 = vector.load %arg5[%c0_2, %c0_3] : memref<8x128xf32, #tpu.memory_space<vmem>>, vector<8x128xf32>
    %c0_4 = arith.constant 0 : index
    %c0_5 = arith.constant 0 : index
    %5 = vector.load %arg3[%c0_4, %c0_5] : memref<8x256xf32, #tpu.memory_space<vmem>>, vector<8x128xf32>
    %6 = arith.addf %3, %5 : vector<8x128xf32>
    %7 = arith.mulf %5, %5 : vector<8x128xf32>
    %8 = arith.addf %4, %7 : vector<8x128xf32>
    %c0_6 = arith.constant 0 : index
    %c128 = arith.constant 128 : index
    %9 = vector.load %arg3[%c0_6, %c128] : memref<8x256xf32, #tpu.memory_space<vmem>>, vector<8x128xf32>
    %10 = arith.addf %6, %9 : vector<8x128xf32>
    %11 = arith.mulf %9, %9 : vector<8x128xf32>
    %12 = arith.addf %8, %11 : vector<8x128xf32>
    %c0_7 = arith.constant 0 : index
    %c0_8 = arith.constant 0 : index
    %13 = vector.load %arg4[%c0_7, %c0_8] : memref<8x128xf32, #tpu.memory_space<vmem>>, vector<8x128xf32>
    tpu.vector_store %arg4[%c0_7, %c0_8], %10 {strides = array<i32>} : memref<8x128xf32, #tpu.memory_space<vmem>>, vector<8x128xf32>,
    %c0_9 = arith.constant 0 : index
    %c0_10 = arith.constant 0 : index
    %14 = vector.load %arg5[%c0_9, %c0_10] : memref<8x128xf32, #tpu.memory_space<vmem>>, vector<8x128xf32>
    tpu.vector_store %arg5[%c0_9, %c0_10], %12 {strides = array<i32>} : memref<8x128xf32, #tpu.memory_space<vmem>>, vector<8x128xf32>,
    return
  }
  func.func @transform_0(%arg0: i32, %arg1: i32, %arg2: i32) -> (i32, i32) {
    %c1_i32 = arith.constant 1 : i32
    %0 = arith.muli %arg1, %c1_i32 : i32
    %1 = arith.addi %0, %arg2 : i32
    %c0_i32 = arith.constant 0 : i32
    return %arg0, %1 : i32, i32
  }
  func.func @transform_1(%arg0: i32, %arg1: i32, %arg2: i32) -> (i32, i32) {
    %c0_i32 = arith.constant 0 : i32
    return %arg0, %arg1 : i32, i32
  }
  func.func @transform_2(%arg0: i32, %arg1: i32, %arg2: i32) -> (i32, i32) {
    %c0_i32 = arith.constant 0 : i32
    return %arg0, %arg1 : i32, i32
  }
}

</mosaic_0001>

<llo_original>
// kernel: tpu_custom_call.1
$region0: #{tpu_custom_call.1}
  #allocation0 [shape = 'u32[]', space=smem, size = 0x4, offset = 0x4, fixed_abs, tag = 'smem constant byte address 0x4 - core index']
  #allocation1 [shape = 'u32[72,128]{1,0:T(1,128)}', space=vmem, size = 0x9000, scoped, tag = 'internal scratch']
  %s0 = inlined_call_operand.hbm [shape: f32[8,256], index: 0, kind: input, shape index: {}]
  %s1 = inlined_call_operand.hbm [shape: f32[8,128], index: 1, kind: output, shape index: {0}]
  %s2 = inlined_call_operand.hbm [shape: f32[8,128], index: 2, kind: output, shape index: {1}]
  %3 = xla_tuple %s1, %s2
  %s4 = sld [smem:[#allocation0]]
  $region30: #{tpu_custom_call.1} parent=0
    _
  %s6 = ssub.s32 1, %s4
  %s7 = scalar_select 0, %s6, %s4
  $region1: #{tpu_custom_call.1} parent=0
    #allocation2 [shape = 'u8[8192]{0}', space=vmem, size = 0x2000, scoped, tag = 'input window, operand 0, single buffered']
    #allocation3 [shape = 's32[1]{0}', space=sflag, size = 0x4, scoped, tag = 'scoped memory for tpu_custom_call.1']
    #allocation4 [shape = 's32[1]{0}', space=sflag, size = 0x4, scoped, tag = 'scoped memory for tpu_custom_call.1']
    #allocation5 [shape = 'u8[4096]{0}', space=vmem, size = 0x1000, scoped, tag = 'output window, operand 0, single buffered']
    #allocation6 [shape = 'u8[4096]{0}', space=vmem, size = 0x1000, scoped, tag = 'output window, operand 1, single buffered']
    #allocation7 [shape = 's32[1]{0}', space=sflag, size = 0x4, scoped, tag = 'scoped memory for tpu_custom_call.1']
    %8 = vsyncpa [#allocation3], 0
    %9 = vsyncpa [#allocation4], 0
    %10 = vsyncpa [#allocation7], 0
    // Predicated region
    $region2: #{tpu_custom_call.1} parent=1 // pred_check
      _
    $region3: #{tpu_custom_call.1} parent=1 // pred_check_branch
      %12 = sbr.rel (0) target = $region5
    $region4: #{tpu_custom_call.1} parent=1 // pred_region
      %s13 = sadd.s32 0, 0
      %s14 = smul.u32 2, %s13
      %16 = vsyncadd [#allocation3], 0
      %s17 = smul.addr %s14, 8
      %s18 = scalar_lea.hbm %s0, %s17
      %s20 = sshll.u32 %s18, 4
      %s21 = int_to_ptr.hbm [resolvable:$true] %s20
      %s22 = sshll.u32 [#allocation2], 4
      %s23 = int_to_ptr.vmem [resolvable:$true] %s22
      %25 = dma.hbm_to_vmem [thread:$0]  %s21, 256, %s23, [#allocation3]
    $region5: #{tpu_custom_call.1} parent=1 // pred_fallthru
      _
    // Predicated region
    $region6: #{tpu_custom_call.1} parent=1 // pred_check
      _
    $region7: #{tpu_custom_call.1} parent=1 // pred_check_branch
      %27 = sbr.rel (0) target = $region9
    $region8: #{tpu_custom_call.1} parent=1 // pred_region
      %29 = dma.done [#allocation3], 256
    $region9: #{tpu_custom_call.1} parent=1 // pred_fallthru
      _
    %s30 = sadd.s32 0, 0
    %s31 = smul.u32 2, %s30
    %p32 = scmp.eq.s32.totalorder 0, 0
    // Predicated region
    $region10: #{tpu_custom_call.1} parent=1 // pred_check
      %p33 = pneg %p32
    $region11: #{tpu_custom_call.1} parent=1 // pred_check_branch
      %35 = sbr.rel (%p33) target = $region13
    $region12: #{tpu_custom_call.1} parent=1 // pred_region
      %36 = vst [vmem:[#allocation5] sm:$0xff] 0.0
      %37 = vst [vmem:[#allocation6] sm:$0xff] 0.0
    $region13: #{tpu_custom_call.1} parent=1 // pred_fallthru
      _
    %v38 = vld [vmem:[#allocation5] sm:$0xff]
    %v39 = vld [vmem:[#allocation6] sm:$0xff]
    %v40 = vld [vmem:[#allocation2] sm:$0xff]
    %v41 = vadd.f32 %v38, %v40
    %v42 = vmul.f32 %v40, %v40
    %v43 = vadd.f32 %v39, %v42
    %v44 = vld [vmem:[#allocation2 + $0x8] sm:$0xff]
    %v45 = vadd.f32 %v41, %v44
    %v46 = vmul.f32 %v44, %v44
    %v47 = vadd.f32 %v43, %v46
    %48 = vst [vmem:[#allocation5] sm:$0xff] %v45
    %49 = vst [vmem:[#allocation6] sm:$0xff] %v47
    // Predicated region
    $region14: #{tpu_custom_call.1} parent=1 // pred_check
      _
    $region15: #{tpu_custom_call.1} parent=1 // pred_check_branch
      %51 = sbr.rel (0) target = $region17
    $region16: #{tpu_custom_call.1} parent=1 // pred_region
      %53 = vsyncadd [#allocation4], 0
      %s55 = sshll.u32 [#allocation5], 4
      %s56 = int_to_ptr.vmem [resolvable:$true] %s55
      %s57 = sshll.u32 %s1, 4
      %s58 = int_to_ptr.hbm [resolvable:$true] %s57
      %60 = dma.vmem_to_hbm [thread:$0]  %s56, 128, %s58, [#allocation4]
    $region17: #{tpu_custom_call.1} parent=1 // pred_fallthru
      _
    // Predicated region
    $region18: #{tpu_custom_call.1} parent=1 // pred_check
      _
    $region19: #{tpu_custom_call.1} parent=1 // pred_check_branch
      %62 = sbr.rel (0) target = $region21
    $region20: #{tpu_custom_call.1} parent=1 // pred_region
      %64 = vsyncadd [#allocation7], 0
      %s66 = sshll.u32 [#allocation6], 4
      %s67 = int_to_ptr.vmem [resolvable:$true] %s66
      %s68 = sshll.u32 %s2, 4
      %s69 = int_to_ptr.hbm [resolvable:$true] %s68
      %71 = dma.vmem_to_hbm [thread:$0]  %s67, 128, %s69, [#allocation7]
    $region21: #{tpu_custom_call.1} parent=1 // pred_fallthru
      _
    // Predicated region
    $region22: #{tpu_custom_call.1} parent=1 // pred_check
      _
    $region23: #{tpu_custom_call.1} parent=1 // pred_check_branch
      %73 = sbr.rel (0) target = $region25
    $region24: #{tpu_custom_call.1} parent=1 // pred_region
      %75 = dma.done [#allocation4], 128
    $region25: #{tpu_custom_call.1} parent=1 // pred_fallthru
      _
    // Predicated region
    $region26: #{tpu_custom_call.1} parent=1 // pred_check
      _
    $region27: #{tpu_custom_call.1} parent=1 // pred_check_branch
      %77 = sbr.rel (0) target = $region29
    $region28: #{tpu_custom_call.1} parent=1 // pred_region
      %79 = dma.done [#allocation7], 128
    $region29: #{tpu_custom_call.1} parent=1 // pred_fallthru
      _
    %80 = vsyncpa [#allocation3], 1
    %81 = vsyncpa [#allocation4], 1
    %82 = vsyncpa [#allocation7], 1

</llo_original>
